<compile_context>
chip_gen: v7x
topology: tpu7x:2x2x1
jax: 0.10.0
libtpu: 0.0.40
codegen_flags: <defaults>
</compile_context>

<pallas_src>
import jax
import jax.numpy as jnp
from jax.experimental import pallas as pl
from jax.experimental.pallas import tpu as pltpu


def _ce_kernel(logits_ref, labels_ref, loss_ref, acc_ref):
    """One grid step: accumulate sum of per-row cross entropies for this tile.

    logits_ref: (TN, C) VMEM tile of logits (any float dtype, cast to f32 here)
    labels_ref: (TN, 1)  VMEM tile of int32 class indices (-1 marks padded rows)
    loss_ref:   (1, 1)   f32 output (un-normalized sum over all rows)
    acc_ref:    (1, 1)   f32 VMEM scratch accumulator (persists across grid steps)
    """
    i = pl.program_id(0)

    @pl.when(i == 0)
    def _():
        acc_ref[...] = jnp.zeros_like(acc_ref)

    logits = logits_ref[...].astype(jnp.float32)          # (TN, C)
    labels = labels_ref[...]                              # (TN, 1) int32

    # Numerically stable logsumexp along the class (lane) axis.
    m = jnp.max(logits, axis=-1, keepdims=True)           # (TN, 1)
    lse = jnp.log(jnp.sum(jnp.exp(logits - m), axis=-1, keepdims=True)) + m

    # Target logit via iota==label mask (no one-hot tensor read from HBM).
    cls = jax.lax.broadcasted_iota(jnp.int32, logits.shape, 1)      # (TN, C)
    tgt = jnp.sum(jnp.where(cls == labels, logits, 0.0),
                  axis=-1, keepdims=True)                           # (TN, 1)

    # Mask rows that only exist because of padding (label == -1).
    valid = (labels >= 0).astype(jnp.float32)                        # (TN, 1)
    ce = (lse - tgt) * valid                                         # (TN, 1)

    acc_ref[...] += jnp.sum(ce, axis=0, keepdims=True)               # (1, 1)

    @pl.when(i == pl.num_programs(0) - 1)
    def _():
        loss_ref[...] = acc_ref[...]


def _round_up(x, m):
    return (x + m - 1) // m * m


def maneuver_pred_loss_from_labels(logits, labels, block_rows=1024):
    """logits: (N, C) float logits (f32 or bf16), labels: (N,) int class ids.

    Returns the un-averaged mean CE loss scalar (f32)."""
    N, C = logits.shape
    assert C > 1, "rows with a single class are skipped in the reference module"

    # Tile rows: multiple of 8 sublanes, capped so per-step VMEM stays small.
    tn = min(block_rows, _round_up(N, 8))
    tn = _round_up(tn, 8)
    n_pad = _round_up(N, tn)

    labels = labels.astype(jnp.int32)
    if n_pad != N:
        logits = jnp.pad(logits, ((0, n_pad - N), (0, 0)))
        labels = jnp.pad(labels, (0, n_pad - N), constant_values=-1)
    labels2d = labels.reshape(n_pad, 1)

    grid = (n_pad // tn,)

    total = pl.pallas_call(
        _ce_kernel,
        out_shape=jax.ShapeDtypeStruct((1, 1), jnp.float32),
        grid_spec=pltpu.PrefetchScalarGridSpec(
            num_scalar_prefetch=0,
            grid=grid,
            in_specs=[
                pl.BlockSpec((tn, C), lambda i: (i, 0)),   # logits tile
                pl.BlockSpec((tn, 1), lambda i: (i, 0)),   # label column tile
            ],
            out_specs=pl.BlockSpec((1, 1), lambda i: (0, 0)),
            scratch_shapes=[pltpu.VMEM((1, 1), jnp.float32)],
        ),
        compiler_params=pltpu.CompilerParams(
            dimension_semantics=("arbitrary",),   # reduction over N -> accumulator
        ),
    )(logits, labels2d)

    # Normalize exactly once (not per tile), by the true (un-padded) row count.
    return total[0, 0] * jnp.float32(1.0 / N)


def maneuver_pred_loss(out, gt_mod, block_rows=1024):
    """Mirrors the PyTorch module: out (N, C) logits, gt_mod (N, C) one-hot.

    Assumption (same as the reference usage): every row of gt_mod is strictly
    one-hot and C > 1, so every row participates. Rows with no positive label
    would silently map to class 0 here (they would make the reference crash).
    Returns (loss, loss_calc_num, val_idx, pred_idx)."""
    N, C = out.shape
    # Cheap label extraction in XLA; only logits + (N,1) int32 enter the kernel.
    labels = jnp.argmax(gt_mod == 1, axis=-1).astype(jnp.int32)

    loss = maneuver_pred_loss_from_labels(out, labels, block_rows=block_rows)

    # Host-side bookkeeping (matches the reference under the one-hot assumption).
    loss_calc_num = N
    val_idx = list(range(N))
    pred_idx = list(range(N))
    return loss, loss_calc_num, val_idx, pred_idx


if __name__ == "__main__":
    key = jax.random.PRNGKey(0)
    k1, k2, k3, k4 = jax.random.split(key, 4)

    # Case 1: small batch (exercises row padding: 21 -> 24), 6 maneuver classes.
    N1, C1 = 21, 6
    out1 = jax.random.normal(k1, (N1, C1), dtype=jnp.float32)
    lab1 = jax.random.randint(k2, (N1,), 0, C1)
    gt1 = jax.nn.one_hot(lab1, C1, dtype=jnp.float32)

    loss1, n1, vi1, pi1 = maneuver_pred_loss(out1, gt1)
    loss1 = jax.block_until_ready(loss1)

    ref1 = jnp.mean(jax.nn.logsumexp(out1, axis=-1) - out1[jnp.arange(N1), lab1])
    assert jnp.allclose(loss1, ref1, atol=1e-5, rtol=1e-5), (loss1, ref1)
    assert n1 == N1 and vi1 == list(range(N1)) and pi1 == list(range(N1))

    # Case 2: bf16 logits, multi-tile grid (5 tiles of 64 rows), 16 classes.
    N2, C2 = 300, 16
    out2 = jax.random.normal(k3, (N2, C2), dtype=jnp.float32).astype(jnp.bfloat16)
    lab2 = jax.random.randint(k4, (N2,), 0, C2)
    gt2 = jax.nn.one_hot(lab2, C2, dtype=jnp.float32)

    loss2, n2, _, _ = maneuver_pred_loss(out2, gt2, block_rows=64)
    loss2 = jax.block_until_ready(loss2)

    o2 = out2.astype(jnp.float32)
    ref2 = jnp.mean(jax.nn.logsumexp(o2, axis=-1) - o2[jnp.arange(N2), lab2])
    assert jnp.allclose(loss2, ref2, atol=1e-4, rtol=1e-4), (loss2, ref2)

    print("KERNEL_OK")
</pallas_src>

<mosaic_0001>
module attributes {stable_mosaic.version = 11 : i64} {
  func.func @_ce_kernel(%arg0: i32, %arg1: memref<24x6xf32, #tpu.memory_space<vmem>>, %arg2: memref<24x1xi32, #tpu.memory_space<vmem>>, %arg3: memref<1x1xf32, #tpu.memory_space<vmem>>, %arg4: memref<1x1xf32, #tpu.memory_space<vmem>>) attributes {dimension_semantics = [#tpu.dimension_semantics<arbitrary>], iteration_bounds = array<i64: 1>, scalar_prefetch = 0 : i64, scratch_operands = 1 : i64, tpu.core_type = #tpu.core_type<tc>, window_params = [{transform_indices = @transform_0, window_bounds = array<i64: 24, 6>}, {transform_indices = @transform_1, window_bounds = array<i64: 24, 1>}, {pipeline_mode = #tpu.pipeline_mode<synchronous>, transform_indices = @transform_2, window_bounds = array<i64: 1, 1>}]} {
    %c0_i32 = arith.constant 0 : i32
    %0 = arith.cmpi eq, %arg0, %c0_i32 : i32
    %1 = arith.extui %0 : i1 to i32
    %c0_i32_0 = arith.constant 0 : i32
    %2 = arith.cmpi ne, %1, %c0_i32_0 : i32
    scf.if %2 {
      %cst_15 = arith.constant 0.000000e+00 : f32
      %35 = vector.broadcast %cst_15 : f32 to vector<1x1xf32>
      %c0_16 = arith.constant 0 : index
      %c0_17 = arith.constant 0 : index
      %36 = vector.load %arg4[%c0_16, %c0_17] : memref<1x1xf32, #tpu.memory_space<vmem>>, vector<1x1xf32>
      tpu.vector_store %arg4[%c0_16, %c0_17], %35 {strides = array<i32>} : memref<1x1xf32, #tpu.memory_space<vmem>>, vector<1x1xf32>,
    } else {
    }
    %c0 = arith.constant 0 : index
    %c0_1 = arith.constant 0 : index
    %3 = vector.load %arg1[%c0, %c0_1] : memref<24x6xf32, #tpu.memory_space<vmem>>, vector<24x6xf32>
    %c0_2 = arith.constant 0 : index
    %c0_3 = arith.constant 0 : index
    %4 = vector.load %arg2[%c0_2, %c0_3] : memref<24x1xi32, #tpu.memory_space<vmem>>, vector<24x1xi32>
    %cst = arith.constant dense<0xFF800000> : vector<24xf32>
    %5 = vector.multi_reduction <maximumf>, %3, %cst [1] : vector<24x6xf32> to vector<24xf32>
    %6 = vector.shape_cast %5 : vector<24xf32> to vector<24x1xf32>
    %7 = vector.broadcast %6 : vector<24x1xf32> to vector<24x6xf32>
    %8 = arith.subf %3, %7 : vector<24x6xf32>
    %9 = math.exp %8 : vector<24x6xf32>
    %cst_4 = arith.constant dense<0.000000e+00> : vector<24xf32>
    %10 = vector.multi_reduction <add>, %9, %cst_4 [1] : vector<24x6xf32> to vector<24xf32>
    %11 = vector.shape_cast %10 : vector<24xf32> to vector<24x1xf32>
    %12 = math.log %11 : vector<24x1xf32>
    %13 = arith.addf %12, %6 : vector<24x1xf32>
    %14 = tpu.iota {dimensions = array<i32: 1>} : vector<24x6xi32>
    %15 = vector.broadcast %4 : vector<24x1xi32> to vector<24x6xi32>
    %16 = arith.cmpi eq, %14, %15 : vector<24x6xi32>
    %cst_5 = arith.constant 0.000000e+00 : f32
    %17 = vector.broadcast %cst_5 : f32 to vector<24x6xf32>
    %18 = arith.select %16, %3, %17 : vector<24x6xi1>, vector<24x6xf32>
    %cst_6 = arith.constant dense<0.000000e+00> : vector<24xf32>
    %19 = vector.multi_reduction <add>, %18, %cst_6 [1] : vector<24x6xf32> to vector<24xf32>
    %20 = vector.shape_cast %19 : vector<24xf32> to vector<24x1xf32>
    %c0_i32_7 = arith.constant 0 : i32
    %21 = vector.broadcast %c0_i32_7 : i32 to vector<24x1xi32>
    %22 = arith.cmpi sge, %4, %21 : vector<24x1xi32>
    %23 = arith.extui %22 : vector<24x1xi1> to vector<24x1xi32>
    %24 = arith.sitofp %23 : vector<24x1xi32> to vector<24x1xf32>
    %25 = arith.subf %13, %20 : vector<24x1xf32>
    %26 = arith.mulf %25, %24 : vector<24x1xf32>
    %c0_8 = arith.constant 0 : index
    %c0_9 = arith.constant 0 : index
    %27 = vector.load %arg4[%c0_8, %c0_9] : memref<1x1xf32, #tpu.memory_space<vmem>>, vector<1x1xf32>
    %cst_10 = arith.constant dense<0.000000e+00> : vector<1xf32>
    %28 = vector.multi_reduction <add>, %26, %cst_10 [0] : vector<24x1xf32> to vector<1xf32>
    %29 = vector.shape_cast %28 : vector<1xf32> to vector<1x1xf32>
    %30 = arith.addf %27, %29 : vector<1x1xf32>
    %c0_11 = arith.constant 0 : index
    %c0_12 = arith.constant 0 : index
    %31 = vector.load %arg4[%c0_11, %c0_12] : memref<1x1xf32, #tpu.memory_space<vmem>>, vector<1x1xf32>
    tpu.vector_store %arg4[%c0_11, %c0_12], %30 {strides = array<i32>} : memref<1x1xf32, #tpu.memory_space<vmem>>, vector<1x1xf32>,
    %c0_i32_13 = arith.constant 0 : i32
    %32 = arith.cmpi eq, %arg0, %c0_i32_13 : i32
    %33 = arith.extui %32 : i1 to i32
    %c0_i32_14 = arith.constant 0 : i32
    %34 = arith.cmpi ne, %33, %c0_i32_14 : i32
    scf.if %34 {
      %c0_15 = arith.constant 0 : index
      %c0_16 = arith.constant 0 : index
      %35 = vector.load %arg4[%c0_15, %c0_16] : memref<1x1xf32, #tpu.memory_space<vmem>>, vector<1x1xf32>
      %c0_17 = arith.constant 0 : index
      %c0_18 = arith.constant 0 : index
      %36 = vector.load %arg3[%c0_17, %c0_18] : memref<1x1xf32, #tpu.memory_space<vmem>>, vector<1x1xf32>
      tpu.vector_store %arg3[%c0_17, %c0_18], %35 {strides = array<i32>} : memref<1x1xf32, #tpu.memory_space<vmem>>, vector<1x1xf32>,
    } else {
    }
    return
  }
  func.func @transform_0(%arg0: i32) -> (i32, i32) {
    %c0_i32 = arith.constant 0 : i32
    %c0_i32_0 = arith.constant 0 : i32
    return %arg0, %c0_i32 : i32, i32
  }
  func.func @transform_1(%arg0: i32) -> (i32, i32) {
    %c0_i32 = arith.constant 0 : i32
    %c0_i32_0 = arith.constant 0 : i32
    return %arg0, %c0_i32 : i32, i32
  }
  func.func @transform_2(%arg0: i32) -> (i32, i32) {
    %c0_i32 = arith.constant 0 : i32
    %c0_i32_0 = arith.constant 0 : i32
    %c0_i32_1 = arith.constant 0 : i32
    return %c0_i32, %c0_i32_0 : i32, i32
  }
}

</mosaic_0001>

<llo_original>
// kernel: tpu_custom_call.1
$region0: #{tpu_custom_call.1}
  #allocation0 [shape = 'u32[]', space=smem, size = 0x4, offset = 0x4, fixed_abs, tag = 'smem constant byte address 0x4 - core index']
  #allocation1 [shape = 'u32[144,128]{1,0:T(1,128)}', space=vmem, size = 0x12000, scoped, tag = 'internal scratch']
  #allocation2 [shape = 'f32[1,1]{1,0:T(1,128)}', space=vmem, size = 0x200, scoped, tag = 'scratch operand']
  %s0 = inlined_call_operand.vmem [shape: f32[24,6], index: 0, kind: input, shape index: {}]
  %s1 = inlined_call_operand.vmem [shape: s32[24,1], index: 1, kind: input, shape index: {}]
  %s2 = inlined_call_operand.hbm [shape: f32[1,1], index: 2, kind: output, shape index: {}]
  %s3 = sld [smem:[#allocation0]]
  $region26: #{tpu_custom_call.1} parent=0
    _
  %s5 = ssub.s32 1, %s3
  %s6 = scalar_select 0, %s5, %s3
  $region1: #{tpu_custom_call.1} parent=0
    #allocation3 [shape = 'u8[512]{0}', space=vmem, size = 0x400, scoped, tag = 'output window, operand 0, single buffered']
    #allocation4 [shape = 's32[1]{0}', space=sflag, size = 0x4, scoped, tag = 'scoped memory for tpu_custom_call.1']
    %7 = vsyncpa [#allocation4], 0
    // Predicated region
    $region2: #{tpu_custom_call.1} parent=1 // pred_check
      _
    $region3: #{tpu_custom_call.1} parent=1 // pred_check_branch
      %9 = sbr.rel (0) target = $region5
    $region4: #{tpu_custom_call.1} parent=1 // pred_region
      _
    $region5: #{tpu_custom_call.1} parent=1 // pred_fallthru
      _
    // Predicated region
    $region6: #{tpu_custom_call.1} parent=1 // pred_check
      _
    $region7: #{tpu_custom_call.1} parent=1 // pred_check_branch
      %11 = sbr.rel (0) target = $region9
    $region8: #{tpu_custom_call.1} parent=1 // pred_region
      _
    $region9: #{tpu_custom_call.1} parent=1 // pred_fallthru
      _
    %p12 = scmp.eq.s32.totalorder 0, 0
    // Predicated region
    $region10: #{tpu_custom_call.1} parent=1 // pred_check
      %p13 = pneg %p12
    $region11: #{tpu_custom_call.1} parent=1 // pred_check_branch
      %15 = sbr.rel (%p13) target = $region13
    $region12: #{tpu_custom_call.1} parent=1 // pred_region
      %vm16 = vcmask 0
      %17 = vst.msk [vmem:[#allocation2] sm:$0x1] %vm16, 0.0
    $region13: #{tpu_custom_call.1} parent=1 // pred_fallthru
      _
    %v18 = vld [vmem:[%s0] sm:$0xff]
    %v19 = vld [vmem:[%s0 + $0x8] sm:$0xff]
    %v20 = vld [vmem:[%s0 + $0x10] sm:$0xff]
    %v21 = vld [vmem:[%s1] sm:$0xff]
    %v22 = vld [vmem:[%s1 + $0x8] sm:$0xff]
    %v23 = vld [vmem:[%s1 + $0x10] sm:$0xff]
    %vm24 = vcmask 48128
    %v25 = vsel %vm24, %v18, -inf
    %26 = vmax.xlane.f32.xlu0 %v25
    %v27 = vpop.xlane.xlu0 %26
    %v28 = vsel %vm24, %v19, -inf
    %29 = vmax.xlane.f32.xlu0 %v28
    %v30 = vpop.xlane.xlu0 %29
    %v31 = vsel %vm24, %v20, -inf
    %32 = vmax.xlane.f32.xlu0 %v31
    %v33 = vpop.xlane.xlu0 %32
    %v34 = vsub.f32 %v18, %v27
    %v35 = vsub.f32 %v19, %v30
    %v36 = vsub.f32 %v20, %v33
    %v37 = vmul.f32 %v34, 1.442695
    %v38 = vpow.pop %v37
    %v39 = vmul.f32 %v35, 1.442695
    %v40 = vpow.pop %v39
    %v41 = vmul.f32 %v36, 1.442695
    %v42 = vpow.pop %v41
    %v43 = vsel %vm24, %v38, 0.0
    %44 = vadd.xlane.f32.xlu0 %v43
    %v45 = vpop.xlane.xlu0 %44
    %v46 = vsel %vm24, %v40, 0.0
    %47 = vadd.xlane.f32.xlu0 %v46
    %v48 = vpop.xlane.xlu0 %47
    %v49 = vsel %vm24, %v42, 0.0
    %50 = vadd.xlane.f32.xlu0 %v49
    %v51 = vpop.xlane.xlu0 %50
    %v52 = vlog2.pop %v45
    %v53 = vmul.f32 %v52, 0.6931472
    %v54 = vlog2.pop %v48
    %v55 = vmul.f32 %v54, 0.6931472
    %v56 = vlog2.pop %v51
    %v57 = vmul.f32 %v56, 0.6931472
    %v58 = vadd.f32 %v53, %v27
    %v59 = vadd.f32 %v55, %v30
    %v60 = vadd.f32 %v57, %v33
    %v61 = vlaneseq
    %v62 = vand.u32 %v61, 127
    %63 = vset.pattern.permute.xlu0 0
    %64 = vperm.xlu0 %63, %v21
    %v65 = vpop.permute.xlu0 %64
    %66 = vset.pattern.permute.xlu0 0
    %67 = vperm.xlu0 %66, %v22
    %v68 = vpop.permute.xlu0 %67
    %69 = vset.pattern.permute.xlu0 0
    %70 = vperm.xlu0 %69, %v23
    %v71 = vpop.permute.xlu0 %70
    %vm72 = vcmp.eq.s32.totalorder %v62, %v65
    %vm73 = vcmp.eq.s32.totalorder %v62, %v68
    %vm74 = vcmp.eq.s32.totalorder %v62, %v71
    %v75 = vsel %vm72, %v18, 0.0
    %v76 = vsel %vm73, %v19, 0.0
    %v77 = vsel %vm74, %v20, 0.0
    %v78 = vsel %vm24, %v75, 0.0
    %79 = vadd.xlane.f32.xlu0 %v78
    %v80 = vpop.xlane.xlu0 %79
    %v81 = vsel %vm24, %v76, 0.0
    %82 = vadd.xlane.f32.xlu0 %v81
    %v83 = vpop.xlane.xlu0 %82
    %v84 = vsel %vm24, %v77, 0.0
    %85 = vadd.xlane.f32.xlu0 %v84
    %v86 = vpop.xlane.xlu0 %85
    %vm87 = vcmp.ge.s32.totalorder %v21, 0
    %vm88 = vcmp.ge.s32.totalorder %v22, 0
    %vm89 = vcmp.ge.s32.totalorder %v23, 0
    %v90 = vsel %vm87, 1, 0
    %v91 = vsel %vm88, 1, 0
    %v92 = vsel %vm89, 1, 0
    %v93 = vcvt.s32.f32 %v90
    %v94 = vcvt.s32.f32 %v91
    %v95 = vcvt.s32.f32 %v92
    %v96 = vsub.f32 %v58, %v80
    %v97 = vsub.f32 %v59, %v83
    %v98 = vsub.f32 %v60, %v86
    %v99 = vmul.f32 %v96, %v93
    %v100 = vmul.f32 %v97, %v94
    %v101 = vmul.f32 %v98, %v95
    %v102 = vld [vmem:[#allocation2] sm:$0x1]
    %vm103 = vcmask 7168
    %v104 = vsel %vm103, %v99, 0.0
    %v105 = vsel %vm103, %v100, 0.0
    %v106 = vadd.f32 %v104, %v105
    %v107 = vsel %vm103, %v101, 0.0
    %v108 = vadd.f32 %v106, %v107
    %v109 = vrot.slane %v108, 4
    %v110 = vadd.f32 %v108, %v109
    %v111 = vrot.slane %v110, 2
    %v112 = vadd.f32 %v110, %v111
    %v113 = vrot.slane %v112, 1
    %v114 = vadd.f32 %v112, %v113
    %v115 = vadd.f32 %v102, %v114
    %vm116 = vcmask 0
    %117 = vst.msk [vmem:[#allocation2] sm:$0x1] %vm116, %v115
    // Predicated region
    $region14: #{tpu_custom_call.1} parent=1 // pred_check
      %p118 = pneg %p12
    $region15: #{tpu_custom_call.1} parent=1 // pred_check_branch
      %120 = sbr.rel (%p118) target = $region17
    $region16: #{tpu_custom_call.1} parent=1 // pred_region
      %v121 = vld [vmem:[#allocation2] sm:$0x1]
      %122 = vst.msk [vmem:[#allocation3] sm:$0x1] %vm116, %v121
    $region17: #{tpu_custom_call.1} parent=1 // pred_fallthru
      _
    // Predicated region
    $region18: #{tpu_custom_call.1} parent=1 // pred_check
      _
    $region19: #{tpu_custom_call.1} parent=1 // pred_check_branch
      %124 = sbr.rel (0) target = $region21
    $region20: #{tpu_custom_call.1} parent=1 // pred_region
      %s126 = ssub.s32 16, 16
      %127 = vsyncadd [#allocation4], %s126
      %s129 = sshll.u32 [#allocation3], 4
      %s130 = int_to_ptr.vmem [resolvable:$true] %s129
      %132 = dma.vmem_to_hbm [thread:$0]  %s130, 16, %s2, [#allocation4]
    $region21: #{tpu_custom_call.1} parent=1 // pred_fallthru
      _
    // Predicated region
    $region22: #{tpu_custom_call.1} parent=1 // pred_check
      _
    $region23: #{tpu_custom_call.1} parent=1 // pred_check_branch
      %134 = sbr.rel (0) target = $region25
    $region24: #{tpu_custom_call.1} parent=1 // pred_region
      %135 = dma.done [#allocation4], 16
    $region25: #{tpu_custom_call.1} parent=1 // pred_fallthru
      _
    %136 = vsyncpa [#allocation4], 1

</llo_original>
